<compile_context>
chip_gen: v5e
topology: v5e:2x2
jax: 0.10.0
libtpu: 0.0.40
codegen_flags: <defaults>
</compile_context>

<pallas_src>
import math
import numpy as np

import jax
import jax.numpy as jnp
from jax.experimental import pallas as pl
from jax.experimental.pallas import tpu as pltpu


# ----------------------------------------------------------------------------
# Helpers
# ----------------------------------------------------------------------------
def _round_up(x, m):
    return ((x + m - 1) // m) * m


def _leaky_relu(x):
    return jnp.where(x >= 0, x, 0.2 * x)


def _pick_tile(n, tile_rows):
    """Row-tile choice: big tiles (cheap grid steps), but at least 2 grid steps
    for large n (v7x megacore), and an exact single block for tiny levels so
    block dims never exceed array dims."""
    n = max(int(n), 1)
    t = max(8, min(_round_up(tile_rows, 8), _round_up((n + 1) // 2, 8)))
    return n if t >= n else t


# ----------------------------------------------------------------------------
# Fused MLP kernel (first layer pre-split over the input parts, optional fused
# epilogue).  All matmuls: bf16 operands, f32 accumulation; element-wise in f32.
# ----------------------------------------------------------------------------
def mlp_pallas(xs, w0_parts, w_rest, biases, *, epilogue=None, out_dim=None,
               tile_rows=1024):
    """xs: list of [N, d_i] arrays (the logical input is their concat).
    w0_parts: first-layer weight split by rows to match xs (bf16).
    w_rest / biases: remaining layer weights (bf16) and all biases (f32, (1,d)).
    LeakyReLU(0.2) between layers, none after the last; optional fused
    epilogue(h_f32) -> [N, out_dim]."""
    n = xs[0].shape[0]
    n_in = len(xs)
    n_rest = len(w_rest)
    d_out = out_dim if out_dim is not None else biases[-1].shape[1]
    dtype = xs[0].dtype

    tile = _pick_tile(n, tile_rows)
    grid = (pl.cdiv(n, tile),)

    def kernel(*refs):
        x_refs = refs[:n_in]
        p = refs[n_in:-1]
        o_ref = refs[-1]
        # first layer: sum of partial matmuls (replaces a wrapper-side concat)
        h = p[n_in][...]                                   # bias0 (1, d0), broadcasts
        for t in range(n_in):
            h = h + jnp.dot(x_refs[t][...].astype(jnp.bfloat16), p[t][...],
                            preferred_element_type=jnp.float32)
        if n_rest > 0:
            h = _leaky_relu(h)
        for l in range(n_rest):
            h = jnp.dot(h.astype(jnp.bfloat16), p[n_in + 1 + 2 * l][...],
                        preferred_element_type=jnp.float32) + p[n_in + 2 + 2 * l][...]
            if l < n_rest - 1:
                h = _leaky_relu(h)
        if epilogue is not None:
            h = epilogue(h)
        o_ref[...] = h.astype(o_ref.dtype)

    flat = list(w0_parts) + [biases[0]]
    for w, b in zip(w_rest, biases[1:]):
        flat += [w, b]

    in_specs = [pl.BlockSpec((tile, x.shape[1]), lambda i: (i, 0)) for x in xs]
    in_specs += [pl.BlockSpec(a.shape, lambda i: (0, 0)) for a in flat]

    return pl.pallas_call(
        kernel,
        out_shape=jax.ShapeDtypeStruct((n, d_out), dtype),
        grid=grid,
        in_specs=in_specs,
        out_specs=pl.BlockSpec((tile, d_out), lambda i: (i, 0)),
        compiler_params=pltpu.CompilerParams(dimension_semantics=("parallel",)),
    )(*xs, *flat)


# ----------------------------------------------------------------------------
# Fused lut_query -> lut_attention -> bilinear LUT read, fully lane-batched.
# ----------------------------------------------------------------------------
def lut_chain_pallas(last_nf, nf_s, nf_d, ef, lutq_packed, luta_packed, *,
                     num_luts, lut_sz, lut_dup, tile_rows=512):
    """Returns r: [E, num_luts * lut_dup] with torch's (lut, dup) column order."""
    E = last_nf.shape[0]
    nl, sz, dup = num_luts, lut_sz, lut_dup
    J = nl * dup
    axis_len = nl * (1 + 2 * sz)
    tab_len = nl * sz * sz
    dtype = last_nf.dtype

    q_parts, q_rest, q_b = lutq_packed
    att = luta_packed
    n_q_in = len(q_parts)            # == 3
    n_q_rest = len(q_rest)
    n_mid = len(att['wmid'])

    params = list(q_parts) + [q_b[0]]
    for w, b in zip(q_rest, q_b[1:]):
        params += [w, b]
    params += [att['wq_bd'], att['wx_bd'], att['b0']]
    params += list(att['wmid']) + list(att['bmid'])
    params += [att['wlx'], att['blx'], att['wly'], att['bly'], att['et'], att['sel']]

    tile = _pick_tile(E, tile_rows)
    grid = (pl.cdiv(E, tile),)

    def kernel(ln_ref, ns_ref, nd_ref, ef_ref, *refs):
        o_ref = refs[-1]
        p = refs[:-1]

        # ---- MLP_lut_query (first layer split over the 3 node-feature parts) ----
        q = p[n_q_in][...]                                 # bias0, broadcasts
        for t, xr in enumerate((ln_ref, ns_ref, nd_ref)):
            q = q + jnp.dot(xr[...].astype(jnp.bfloat16), p[t][...],
                            preferred_element_type=jnp.float32)
        idx = n_q_in + 1
        if n_q_rest > 0:
            q = _leaky_relu(q)
        for l in range(n_q_rest):
            q = jnp.dot(q.astype(jnp.bfloat16), p[idx + 2 * l][...],
                        preferred_element_type=jnp.float32) + p[idx + 2 * l + 1][...]
            if l < n_q_rest - 1:
                q = _leaky_relu(q)
        idx += 2 * n_q_rest                                # q: (T, 2*J)

        # ---- MLP_lut_attention, batched over all (lut, dup) pairs ------------
        # first layer: q part and axis part via block-diagonal weights
        axes = ef_ref[:, :axis_len]                        # (T, nl*(1+2*sz))
        h = (jnp.dot(q.astype(jnp.bfloat16), p[idx][...],
                     preferred_element_type=jnp.float32)
             + jnp.dot(axes.astype(jnp.bfloat16), p[idx + 1][...],
                       preferred_element_type=jnp.float32)
             + p[idx + 2][...])
        h = _leaky_relu(h)
        idx += 3
        for l in range(n_mid):                             # 64->64 layers, block-diag
            h = _leaky_relu(
                jnp.dot(h.astype(jnp.bfloat16), p[idx + l][...],
                        preferred_element_type=jnp.float32) + p[idx + n_mid + l][...])
        idx += 2 * n_mid

        # ---- last layer fused with the ax/ay lane expansion -------------------
        ax = jnp.dot(h.astype(jnp.bfloat16), p[idx][...],
                     preferred_element_type=jnp.float32) + p[idx + 1][...]
        ay = jnp.dot(h.astype(jnp.bfloat16), p[idx + 2][...],
                     preferred_element_type=jnp.float32) + p[idx + 3][...]

        # ---- bilinear LUT read: elementwise slab product + selection matmul ---
        tabs = ef_ref[:, axis_len:axis_len + tab_len]      # (T, nl*sz*sz)
        tab = jnp.dot(tabs.astype(jnp.bfloat16), p[idx + 4][...],
                      preferred_element_type=jnp.float32)  # expand per dup
        prod = ax * ay * tab                               # (T, J*sz*sz)
        r = jnp.dot(prod.astype(jnp.bfloat16), p[idx + 5][...],
                    preferred_element_type=jnp.float32)    # (T, J)
        o_ref[...] = r.astype(o_ref.dtype)

    in_specs = [pl.BlockSpec((tile, last_nf.shape[1]), lambda i: (i, 0)),
                pl.BlockSpec((tile, nf_s.shape[1]), lambda i: (i, 0)),
                pl.BlockSpec((tile, nf_d.shape[1]), lambda i: (i, 0)),
                pl.BlockSpec((tile, ef.shape[1]), lambda i: (i, 0))]
    in_specs += [pl.BlockSpec(a.shape, lambda i: (0, 0)) for a in params]

    return pl.pallas_call(
        kernel,
        out_shape=jax.ShapeDtypeStruct((E, J), dtype),
        grid=grid,
        in_specs=in_specs,
        out_specs=pl.BlockSpec((tile, J), lambda i: (i, 0)),
        compiler_params=pltpu.CompilerParams(dimension_semantics=("parallel",)),
    )(last_nf, nf_s, nf_d, ef, *params)


# ----------------------------------------------------------------------------
# Parameter init + one-time packing (bf16 matmul operands, f32 biases,
# first-layer row splits, block-diag / expansion / selection matrices).
# ----------------------------------------------------------------------------
def init_mlp(key, sizes):
    ws, bs = [], []
    for i in range(1, len(sizes)):
        key, kw, kb = jax.random.split(key, 3)
        bound = 1.0 / math.sqrt(sizes[i - 1])
        ws.append(jax.random.uniform(kw, (sizes[i - 1], sizes[i]), jnp.float32, -bound, bound))
        bs.append(jax.random.uniform(kb, (1, sizes[i]), jnp.float32, -bound, bound))
    return key, (ws, bs)


def _pack_split(params, split_dims):
    ws, bs = params
    w0 = np.asarray(ws[0], np.float32)
    parts, off = [], 0
    for d in split_dims:
        parts.append(jnp.asarray(w0[off:off + d], jnp.bfloat16))
        off += d
    assert off == w0.shape[0]
    w_rest = [jnp.asarray(w, jnp.bfloat16) for w in ws[1:]]
    biases = [jnp.asarray(b, jnp.float32) for b in bs]
    return (parts, w_rest, biases)


def _pack_lut_attention(params, nl, sz, dup):
    ws = [np.asarray(w, np.float32) for w in params[0]]
    bs = [np.asarray(b, np.float32) for b in params[1]]
    na = len(ws)
    assert na >= 2
    J, aw, hw, s2 = nl * dup, 1 + 2 * sz, ws[0].shape[1], sz * sz

    # first layer: input = [q_pair(2) || axis(1+2*sz)]  (torch.cat([q, axis]))
    w0q, w0x = ws[0][:2], ws[0][2:]
    wq_bd = np.zeros((2 * J, hw * J), np.float32)
    wx_bd = np.zeros((nl * aw, hw * J), np.float32)
    for l in range(nl):
        for d in range(dup):
            j = l * dup + d
            wq_bd[2 * j:2 * j + 2, hw * j:hw * (j + 1)] = w0q
            wx_bd[l * aw:(l + 1) * aw, hw * j:hw * (j + 1)] = w0x
    b0_t = np.tile(bs[0], (1, J))

    wmids, bmids = [], []
    for li in range(1, na - 1):
        w = ws[li]
        bd = np.zeros((w.shape[0] * J, w.shape[1] * J), np.float32)
        for j in range(J):
            bd[j * w.shape[0]:(j + 1) * w.shape[0], j * w.shape[1]:(j + 1) * w.shape[1]] = w
        wmids.append(bd)
        bmids.append(np.tile(bs[li], (1, J)))

    # last layer (hw -> 2*sz), fused with the ax / ay lane expansion:
    # column (j, i, k) of ax-slab <- wl[:, i];  of ay-slab <- wl[:, sz+k]
    wl, bl = ws[-1], bs[-1]
    wlx = np.zeros((hw * J, s2 * J), np.float32)
    wly = np.zeros((hw * J, s2 * J), np.float32)
    blx = np.zeros((1, s2 * J), np.float32)
    bly = np.zeros((1, s2 * J), np.float32)
    for j in range(J):
        for i in range(sz):
            for k in range(sz):
                c = j * s2 + i * sz + k
                wlx[j * hw:(j + 1) * hw, c] = wl[:, i]
                wly[j * hw:(j + 1) * hw, c] = wl[:, sz + k]
                blx[0, c] = bl[0, i]
                bly[0, c] = bl[0, sz + k]

    # table lane-duplication (per dup) and block-selection (sum over sz*sz)
    et = np.zeros((nl * s2, s2 * J), np.float32)
    for l in range(nl):
        for d in range(dup):
            j = l * dup + d
            for m in range(s2):
                et[l * s2 + m, j * s2 + m] = 1.0
    sel = np.zeros((s2 * J, J), np.float32)
    for j in range(J):
        sel[j * s2:(j + 1) * s2, j] = 1.0

    bf = lambda a: jnp.asarray(a, jnp.bfloat16)
    f32 = lambda a: jnp.asarray(a, jnp.float32)
    return dict(wq_bd=bf(wq_bd), wx_bd=bf(wx_bd), b0=f32(b0_t),
                wmid=[bf(w) for w in wmids], bmid=[f32(b) for b in bmids],
                wlx=bf(wlx), blx=f32(blx), wly=bf(wly), bly=f32(bly),
                et=bf(et), sel=bf(sel))


# ----------------------------------------------------------------------------
# SignalProp forward (JAX + Pallas)
# ----------------------------------------------------------------------------
class SignalPropPallas:
    def __init__(self, in_nf, in_cell_num_luts, in_cell_lut_sz, out_nf, out_cef,
                 h1=32, h2=32, lut_dup=4, key=None):
        self.in_nf = in_nf
        self.in_cell_num_luts = in_cell_num_luts
        self.in_cell_lut_sz = in_cell_lut_sz
        self.out_nf = out_nf
        self.out_cef = out_cef
        self.h1, self.h2, self.lut_dup = h1, h2, lut_dup

        key = jax.random.PRNGKey(42) if key is None else key
        key, netprop = init_mlp(key, (out_nf + 2 * in_nf, 64, 64, 64, 64, out_nf))
        key, lut_query = init_mlp(key, (out_nf + 2 * in_nf, 64, 64, 64,
                                        in_cell_num_luts * lut_dup * 2))
        key, lut_att = init_mlp(key, (1 + 2 + 2 * in_cell_lut_sz, 64, 64, 64,
                                      2 * in_cell_lut_sz))
        key, cellarc = init_mlp(key, (out_nf + 2 * in_nf + in_cell_num_luts * lut_dup,
                                      64, 64, 64, 1 + h1 + h2 + out_cef))
        key, cellreduce = init_mlp(key, (in_nf + h1 + h2, 64, 64, 64, out_nf))

        # One-time weight prep (casts, splits, block-diag construction).
        self.netprop = _pack_split(netprop, (out_nf, in_nf, in_nf))
        self.lut_query = _pack_split(lut_query, (out_nf, in_nf, in_nf))
        self.lut_att = _pack_lut_attention(lut_att, in_cell_num_luts,
                                           in_cell_lut_sz, lut_dup)
        self.cellarc = _pack_split(cellarc, (out_nf, in_nf, in_nf,
                                             in_cell_num_luts * lut_dup))
        self.cellreduce = _pack_split(cellreduce, (in_nf, h1, h2))

        h1_, h2_, out_cef_ = h1, h2, out_cef

        def cellarc_epilogue(h):
            # sigmoid gate + f1*k, f2*k fused into the kernel (EUP + VPU filler)
            k = 1.0 / (1.0 + jnp.exp(-h[:, :1]))
            gated = h[:, 1:1 + h1_ + h2_] * k
            return jnp.concatenate([gated, h[:, 1 + h1_ + h2_:]], axis=1)

        def net_level(new_nf, prev, nf, src, dst, level_nodes, *, n_nodes):
            efn = mlp_pallas([prev[src], nf[src], nf[dst]], *self.netprop,
                             tile_rows=1024)                       # MLP_netprop
            agg = jax.ops.segment_sum(efn, dst, num_segments=n_nodes)
            return new_nf.at[level_nodes].set(agg[level_nodes])

        def cell_level(new_nf, efce, prev, nf, cell_ef, src, dst, eids,
                       level_nodes, *, n_nodes):
            last, nfs, nfd = prev[src], nf[src], nf[dst]
            r = lut_chain_pallas(last, nfs, nfd, cell_ef[eids],
                                 self.lut_query, self.lut_att,
                                 num_luts=self.in_cell_num_luts,
                                 lut_sz=self.in_cell_lut_sz,
                                 lut_dup=self.lut_dup, tile_rows=512)
            x = mlp_pallas([last, nfs, nfd, r], *self.cellarc,
                           epilogue=cellarc_epilogue,
                           out_dim=h1_ + h2_ + out_cef_,
                           tile_rows=1024)                          # MLP_cellarc_msg
            efc1 = x[:, :h1_]
            efc2 = x[:, h1_:h1_ + h2_]
            cef = x[:, h1_ + h2_:]
            nfc1 = jax.ops.segment_sum(efc1, dst, num_segments=n_nodes)
            nfc2 = jax.ops.segment_max(efc2, dst, num_segments=n_nodes)
            nfc2 = jnp.where(jnp.isfinite(nfc2), nfc2, 0.0)         # zero-degree fill
            x3 = mlp_pallas([nf[level_nodes], nfc1[level_nodes], nfc2[level_nodes]],
                            *self.cellreduce, tile_rows=1024)       # MLP_cellreduce
            new_nf = new_nf.at[level_nodes].set(x3)
            efce = efce.at[eids].set(cef)
            return new_nf, efce

        # jit the per-level paths (cached per edge/node-count signature)
        self._net_level = jax.jit(net_level, static_argnames=("n_nodes",))
        self._cell_level = jax.jit(cell_level, static_argnames=("n_nodes",))

    def forward(self, graph, ts, nf, n_atslew, groundtruth=False):
        topo = ts['topo']
        assert len(topo) % 2 == 0, 'The number of logic levels must be even (net, cell, net)'
        N = graph['num_nodes']
        net_src = np.asarray(graph['net_src'], np.int32)
        net_dst = np.asarray(graph['net_dst'], np.int32)
        cell_src = np.asarray(graph['cell_src'], np.int32)
        cell_dst = np.asarray(graph['cell_dst'], np.int32)
        cell_ef = graph['cell_ef']

        new_nf = jnp.zeros((N, self.out_nf), nf.dtype)
        pi = np.asarray(ts['pi_nodes'], np.int32)
        new_nf = new_nf.at[pi].set(n_atslew[pi])                    # node_skip_level_o
        efce = jnp.zeros((cell_src.shape[0], self.out_cef), nf.dtype)

        # TODO(synk): the data-dependent edge selection below (np.isin / nonzero)
        # stays on the host; it is graph bookkeeping, not dense compute.
        def run_net(new_nf, level_nodes, prev):
            level_nodes = np.asarray(level_nodes, np.int32)
            eids = np.nonzero(np.isin(net_dst, level_nodes))[0].astype(np.int32)
            s, d = net_src[eids], net_dst[eids]
            return self._net_level(new_nf, prev, nf, s, d, level_nodes, n_nodes=N)

        def run_cell(new_nf, efce, level_nodes, prev):
            level_nodes = np.asarray(level_nodes, np.int32)
            eids = np.nonzero(np.isin(cell_dst, level_nodes))[0].astype(np.int32)
            s, d = cell_src[eids], cell_dst[eids]
            return self._cell_level(new_nf, efce, prev, nf, cell_ef, s, d, eids,
                                    level_nodes, n_nodes=N)

        if groundtruth:
            new_nf = run_net(new_nf, ts['input_nodes'], n_atslew)
            new_nf, efce = run_cell(new_nf, efce, ts['output_nodes_nonpi'], n_atslew)
        else:
            for i in range(1, len(topo)):
                if i % 2 == 1:
                    new_nf = run_net(new_nf, topo[i], new_nf)
                else:
                    new_nf, efce = run_cell(new_nf, efce, topo[i], new_nf)
        return new_nf, efce


# ----------------------------------------------------------------------------
# Demo
# ----------------------------------------------------------------------------
if __name__ == "__main__":
    in_nf, num_luts, lut_sz, out_nf, out_cef = 4, 2, 4, 4, 2
    h1 = h2 = 8
    lut_dup = 4

    model = SignalPropPallas(in_nf, num_luts, lut_sz, out_nf, out_cef,
                             h1=h1, h2=h2, lut_dup=lut_dup,
                             key=jax.random.PRNGKey(42))

    key = jax.random.PRNGKey(0)
    kx, ka, ke = jax.random.split(key, 3)

    # small synthetic timing graph: 4 PI nodes -> 2 net-level -> 2 cell-level -> 2 net-level
    N = 10
    nf = jax.random.normal(kx, (N, in_nf), jnp.float32)
    n_atslew = jax.random.normal(ka, (N, out_nf), jnp.float32)
    ef_dim = num_luts * (1 + 2 * lut_sz) + num_luts * lut_sz * lut_sz   # axes + tables
    cell_ef = jax.random.normal(ke, (4, ef_dim), jnp.float32)

    graph = dict(
        num_nodes=N,
        net_src=np.array([0, 1, 2, 3, 6, 7, 6, 7]),
        net_dst=np.array([4, 4, 5, 5, 8, 8, 9, 9]),
        cell_src=np.array([4, 5, 4, 5]),
        cell_dst=np.array([6, 6, 7, 7]),
        cell_ef=cell_ef,
    )
    ts = dict(
        topo=[np.array([0, 1, 2, 3]), np.array([4, 5]),
              np.array([6, 7]), np.array([8, 9])],
        pi_nodes=np.array([0, 1, 2, 3]),
    )

    new_nf, efce = model.forward(graph, ts, nf, n_atslew, groundtruth=False)
    jax.block_until_ready((new_nf, efce))
    assert new_nf.shape == (N, out_nf) and efce.shape == (4, out_cef)
    assert bool(jnp.all(jnp.isfinite(new_nf))) and bool(jnp.all(jnp.isfinite(efce)))
    print("KERNEL_OK")
</pallas_src>

<mosaic_0001>
module attributes {stable_mosaic.version = 11 : i64} {
  func.func @kernel(%arg0: i32, %arg1: memref<4x4xf32, #tpu.memory_space<vmem>>, %arg2: memref<4x4xf32, #tpu.memory_space<vmem>>, %arg3: memref<4x4xf32, #tpu.memory_space<vmem>>, %arg4: memref<4x64xbf16, #tpu.memory_space<vmem>>, %arg5: memref<4x64xbf16, #tpu.memory_space<vmem>>, %arg6: memref<4x64xbf16, #tpu.memory_space<vmem>>, %arg7: memref<1x64xf32, #tpu.memory_space<vmem>>, %arg8: memref<64x64xbf16, #tpu.memory_space<vmem>>, %arg9: memref<1x64xf32, #tpu.memory_space<vmem>>, %arg10: memref<64x64xbf16, #tpu.memory_space<vmem>>, %arg11: memref<1x64xf32, #tpu.memory_space<vmem>>, %arg12: memref<64x64xbf16, #tpu.memory_space<vmem>>, %arg13: memref<1x64xf32, #tpu.memory_space<vmem>>, %arg14: memref<64x4xbf16, #tpu.memory_space<vmem>>, %arg15: memref<1x4xf32, #tpu.memory_space<vmem>>, %arg16: memref<4x4xf32, #tpu.memory_space<vmem>>) attributes {dimension_semantics = [#tpu.dimension_semantics<parallel>], iteration_bounds = array<i64: 1>, scalar_prefetch = 0 : i64, scratch_operands = 0 : i64, tpu.core_type = #tpu.core_type<tc>, window_params = [{transform_indices = @transform_0, window_bounds = array<i64: 4, 4>}, {transform_indices = @transform_1, window_bounds = array<i64: 4, 4>}, {transform_indices = @transform_2, window_bounds = array<i64: 4, 4>}, {pipeline_mode = #tpu.pipeline_mode<synchronous>, transform_indices = @transform_3, window_bounds = array<i64: 4, 64>}, {pipeline_mode = #tpu.pipeline_mode<synchronous>, transform_indices = @transform_4, window_bounds = array<i64: 4, 64>}, {pipeline_mode = #tpu.pipeline_mode<synchronous>, transform_indices = @transform_5, window_bounds = array<i64: 4, 64>}, {pipeline_mode = #tpu.pipeline_mode<synchronous>, transform_indices = @transform_6, window_bounds = array<i64: 1, 64>}, {pipeline_mode = #tpu.pipeline_mode<synchronous>, transform_indices = @transform_7, window_bounds = array<i64: 64, 64>}, {pipeline_mode = #tpu.pipeline_mode<synchronous>, transform_indices = @transform_8, window_bounds = array<i64: 1, 64>}, {pipeline_mode = #tpu.pipeline_mode<synchronous>, transform_indices = @transform_9, window_bounds = array<i64: 64, 64>}, {pipeline_mode = #tpu.pipeline_mode<synchronous>, transform_indices = @transform_10, window_bounds = array<i64: 1, 64>}, {pipeline_mode = #tpu.pipeline_mode<synchronous>, transform_indices = @transform_11, window_bounds = array<i64: 64, 64>}, {pipeline_mode = #tpu.pipeline_mode<synchronous>, transform_indices = @transform_12, window_bounds = array<i64: 1, 64>}, {pipeline_mode = #tpu.pipeline_mode<synchronous>, transform_indices = @transform_13, window_bounds = array<i64: 64, 4>}, {pipeline_mode = #tpu.pipeline_mode<synchronous>, transform_indices = @transform_14, window_bounds = array<i64: 1, 4>}, {transform_indices = @transform_15, window_bounds = array<i64: 4, 4>}]} {
    %c0 = arith.constant 0 : index
    %c0_0 = arith.constant 0 : index
    %0 = vector.load %arg7[%c0, %c0_0] : memref<1x64xf32, #tpu.memory_space<vmem>>, vector<1x64xf32>
    %c0_1 = arith.constant 0 : index
    %c0_2 = arith.constant 0 : index
    %1 = vector.load %arg1[%c0_1, %c0_2] : memref<4x4xf32, #tpu.memory_space<vmem>>, vector<4x4xf32>
    %2 = arith.truncf %1 : vector<4x4xf32> to vector<4x4xbf16>
    %c0_3 = arith.constant 0 : index
    %c0_4 = arith.constant 0 : index
    %3 = vector.load %arg4[%c0_3, %c0_4] : memref<4x64xbf16, #tpu.memory_space<vmem>>, vector<4x64xbf16>
    %cst = arith.constant dense<0.000000e+00> : vector<4x64xf32>
    %4 = tpu.matmul %2, %3, %cst {dimension_numbers = #tpu.dot_dimension_numbers<[1], [0], [0], [1], [0, 0, 1, 1], [], []>} : vector<4x4xbf16>, vector<4x64xbf16>, vector<4x64xf32> -> vector<4x64xf32>
    %5 = vector.broadcast %0 : vector<1x64xf32> to vector<4x64xf32>
    %6 = arith.addf %5, %4 : vector<4x64xf32>
    %c0_5 = arith.constant 0 : index
    %c0_6 = arith.constant 0 : index
    %7 = vector.load %arg2[%c0_5, %c0_6] : memref<4x4xf32, #tpu.memory_space<vmem>>, vector<4x4xf32>
    %8 = arith.truncf %7 : vector<4x4xf32> to vector<4x4xbf16>
    %c0_7 = arith.constant 0 : index
    %c0_8 = arith.constant 0 : index
    %9 = vector.load %arg5[%c0_7, %c0_8] : memref<4x64xbf16, #tpu.memory_space<vmem>>, vector<4x64xbf16>
    %cst_9 = arith.constant dense<0.000000e+00> : vector<4x64xf32>
    %10 = tpu.matmul %8, %9, %cst_9 {dimension_numbers = #tpu.dot_dimension_numbers<[1], [0], [0], [1], [0, 0, 1, 1], [], []>} : vector<4x4xbf16>, vector<4x64xbf16>, vector<4x64xf32> -> vector<4x64xf32>
    %11 = arith.addf %6, %10 : vector<4x64xf32>
    %c0_10 = arith.constant 0 : index
    %c0_11 = arith.constant 0 : index
    %12 = vector.load %arg3[%c0_10, %c0_11] : memref<4x4xf32, #tpu.memory_space<vmem>>, vector<4x4xf32>
    %13 = arith.truncf %12 : vector<4x4xf32> to vector<4x4xbf16>
    %c0_12 = arith.constant 0 : index
    %c0_13 = arith.constant 0 : index
    %14 = vector.load %arg6[%c0_12, %c0_13] : memref<4x64xbf16, #tpu.memory_space<vmem>>, vector<4x64xbf16>
    %cst_14 = arith.constant dense<0.000000e+00> : vector<4x64xf32>
    %15 = tpu.matmul %13, %14, %cst_14 {dimension_numbers = #tpu.dot_dimension_numbers<[1], [0], [0], [1], [0, 0, 1, 1], [], []>} : vector<4x4xbf16>, vector<4x64xbf16>, vector<4x64xf32> -> vector<4x64xf32>
    %16 = arith.addf %11, %15 : vector<4x64xf32>
    %cst_15 = arith.constant 0.000000e+00 : f32
    %17 = vector.broadcast %cst_15 : f32 to vector<4x64xf32>
    %18 = arith.cmpf oge, %16, %17 : vector<4x64xf32>
    %cst_16 = arith.constant 2.000000e-01 : f32
    %19 = vector.broadcast %cst_16 : f32 to vector<4x64xf32>
    %20 = arith.mulf %19, %16 : vector<4x64xf32>
    %21 = arith.select %18, %16, %20 : vector<4x64xi1>, vector<4x64xf32>
    %22 = arith.truncf %21 : vector<4x64xf32> to vector<4x64xbf16>
    %c0_17 = arith.constant 0 : index
    %c0_18 = arith.constant 0 : index
    %23 = vector.load %arg8[%c0_17, %c0_18] : memref<64x64xbf16, #tpu.memory_space<vmem>>, vector<64x64xbf16>
    %cst_19 = arith.constant dense<0.000000e+00> : vector<4x64xf32>
    %24 = tpu.matmul %22, %23, %cst_19 {dimension_numbers = #tpu.dot_dimension_numbers<[1], [0], [0], [1], [0, 0, 1, 1], [], []>} : vector<4x64xbf16>, vector<64x64xbf16>, vector<4x64xf32> -> vector<4x64xf32>
    %c0_20 = arith.constant 0 : index
    %c0_21 = arith.constant 0 : index
    %25 = vector.load %arg9[%c0_20, %c0_21] : memref<1x64xf32, #tpu.memory_space<vmem>>, vector<1x64xf32>
    %26 = vector.broadcast %25 : vector<1x64xf32> to vector<4x64xf32>
    %27 = arith.addf %24, %26 : vector<4x64xf32>
    %cst_22 = arith.constant 0.000000e+00 : f32
    %28 = vector.broadcast %cst_22 : f32 to vector<4x64xf32>
    %29 = arith.cmpf oge, %27, %28 : vector<4x64xf32>
    %cst_23 = arith.constant 2.000000e-01 : f32
    %30 = vector.broadcast %cst_23 : f32 to vector<4x64xf32>
    %31 = arith.mulf %30, %27 : vector<4x64xf32>
    %32 = arith.select %29, %27, %31 : vector<4x64xi1>, vector<4x64xf32>
    %33 = arith.truncf %32 : vector<4x64xf32> to vector<4x64xbf16>
    %c0_24 = arith.constant 0 : index
    %c0_25 = arith.constant 0 : index
    %34 = vector.load %arg10[%c0_24, %c0_25] : memref<64x64xbf16, #tpu.memory_space<vmem>>, vector<64x64xbf16>
    %cst_26 = arith.constant dense<0.000000e+00> : vector<4x64xf32>
    %35 = tpu.matmul %33, %34, %cst_26 {dimension_numbers = #tpu.dot_dimension_numbers<[1], [0], [0], [1], [0, 0, 1, 1], [], []>} : vector<4x64xbf16>, vector<64x64xbf16>, vector<4x64xf32> -> vector<4x64xf32>
    %c0_27 = arith.constant 0 : index
    %c0_28 = arith.constant 0 : index
    %36 = vector.load %arg11[%c0_27, %c0_28] : memref<1x64xf32, #tpu.memory_space<vmem>>, vector<1x64xf32>
    %37 = vector.broadcast %36 : vector<1x64xf32> to vector<4x64xf32>
    %38 = arith.addf %35, %37 : vector<4x64xf32>
    %cst_29 = arith.constant 0.000000e+00 : f32
    %39 = vector.broadcast %cst_29 : f32 to vector<4x64xf32>
    %40 = arith.cmpf oge, %38, %39 : vector<4x64xf32>
    %cst_30 = arith.constant 2.000000e-01 : f32
    %41 = vector.broadcast %cst_30 : f32 to vector<4x64xf32>
    %42 = arith.mulf %41, %38 : vector<4x64xf32>
    %43 = arith.select %40, %38, %42 : vector<4x64xi1>, vector<4x64xf32>
    %44 = arith.truncf %43 : vector<4x64xf32> to vector<4x64xbf16>
    %c0_31 = arith.constant 0 : index
    %c0_32 = arith.constant 0 : index
    %45 = vector.load %arg12[%c0_31, %c0_32] : memref<64x64xbf16, #tpu.memory_space<vmem>>, vector<64x64xbf16>
    %cst_33 = arith.constant dense<0.000000e+00> : vector<4x64xf32>
    %46 = tpu.matmul %44, %45, %cst_33 {dimension_numbers = #tpu.dot_dimension_numbers<[1], [0], [0], [1], [0, 0, 1, 1], [], []>} : vector<4x64xbf16>, vector<64x64xbf16>, vector<4x64xf32> -> vector<4x64xf32>
    %c0_34 = arith.constant 0 : index
    %c0_35 = arith.constant 0 : index
    %47 = vector.load %arg13[%c0_34, %c0_35] : memref<1x64xf32, #tpu.memory_space<vmem>>, vector<1x64xf32>
    %48 = vector.broadcast %47 : vector<1x64xf32> to vector<4x64xf32>
    %49 = arith.addf %46, %48 : vector<4x64xf32>
    %cst_36 = arith.constant 0.000000e+00 : f32
    %50 = vector.broadcast %cst_36 : f32 to vector<4x64xf32>
    %51 = arith.cmpf oge, %49, %50 : vector<4x64xf32>
    %cst_37 = arith.constant 2.000000e-01 : f32
    %52 = vector.broadcast %cst_37 : f32 to vector<4x64xf32>
    %53 = arith.mulf %52, %49 : vector<4x64xf32>
    %54 = arith.select %51, %49, %53 : vector<4x64xi1>, vector<4x64xf32>
    %55 = arith.truncf %54 : vector<4x64xf32> to vector<4x64xbf16>
    %c0_38 = arith.constant 0 : index
    %c0_39 = arith.constant 0 : index
    %56 = vector.load %arg14[%c0_38, %c0_39] : memref<64x4xbf16, #tpu.memory_space<vmem>>, vector<64x4xbf16>
    %cst_40 = arith.constant dense<0.000000e+00> : vector<4x4xf32>
    %57 = tpu.matmul %55, %56, %cst_40 {dimension_numbers = #tpu.dot_dimension_numbers<[1], [0], [0], [1], [0, 0, 1, 1], [], []>} : vector<4x64xbf16>, vector<64x4xbf16>, vector<4x4xf32> -> vector<4x4xf32>
    %c0_41 = arith.constant 0 : index
    %c0_42 = arith.constant 0 : index
    %58 = vector.load %arg15[%c0_41, %c0_42] : memref<1x4xf32, #tpu.memory_space<vmem>>, vector<1x4xf32>
    %59 = vector.broadcast %58 : vector<1x4xf32> to vector<4x4xf32>
    %60 = arith.addf %57, %59 : vector<4x4xf32>
    %c0_43 = arith.constant 0 : index
    %c0_44 = arith.constant 0 : index
    %61 = vector.load %arg16[%c0_43, %c0_44] : memref<4x4xf32, #tpu.memory_space<vmem>>, vector<4x4xf32>
    tpu.vector_store %arg16[%c0_43, %c0_44], %60 {strides = array<i32>} : memref<4x4xf32, #tpu.memory_space<vmem>>, vector<4x4xf32>,
    return
  }
  func.func @transform_0(%arg0: i32) -> (i32, i32) {
    %c0_i32 = arith.constant 0 : i32
    %c0_i32_0 = arith.constant 0 : i32
    return %arg0, %c0_i32 : i32, i32
  }
  func.func @transform_1(%arg0: i32) -> (i32, i32) {
    %c0_i32 = arith.constant 0 : i32
    %c0_i32_0 = arith.constant 0 : i32
    return %arg0, %c0_i32 : i32, i32
  }
  func.func @transform_2(%arg0: i32) -> (i32, i32) {
    %c0_i32 = arith.constant 0 : i32
    %c0_i32_0 = arith.constant 0 : i32
    return %arg0, %c0_i32 : i32, i32
  }
  func.func @transform_3(%arg0: i32) -> (i32, i32) {
    %c0_i32 = arith.constant 0 : i32
    %c0_i32_0 = arith.constant 0 : i32
    %c0_i32_1 = arith.constant 0 : i32
    return %c0_i32, %c0_i32_0 : i32, i32
  }
  func.func @transform_4(%arg0: i32) -> (i32, i32) {
    %c0_i32 = arith.constant 0 : i32
    %c0_i32_0 = arith.constant 0 : i32
    %c0_i32_1 = arith.constant 0 : i32
    return %c0_i32, %c0_i32_0 : i32, i32
  }
  func.func @transform_5(%arg0: i32) -> (i32, i32) {
    %c0_i32 = arith.constant 0 : i32
    %c0_i32_0 = arith.constant 0 : i32
    %c0_i32_1 = arith.constant 0 : i32
    return %c0_i32, %c0_i32_0 : i32, i32
  }
  func.func @transform_6(%arg0: i32) -> (i32, i32) {
    %c0_i32 = arith.constant 0 : i32
    %c0_i32_0 = arith.constant 0 : i32
    %c0_i32_1 = arith.constant 0 : i32
    return %c0_i32, %c0_i32_0 : i32, i32
  }
  func.func @transform_7(%arg0: i32) -> (i32, i32) {
    %c0_i32 = arith.constant 0 : i32
    %c0_i32_0 = arith.constant 0 : i32
    %c0_i32_1 = arith.constant 0 : i32
    return %c0_i32, %c0_i32_0 : i32, i32
  }
  func.func @transform_8(%arg0: i32) -> (i32, i32) {
    %c0_i32 = arith.constant 0 : i32
    %c0_i32_0 = arith.constant 0 : i32
    %c0_i32_1 = arith.constant 0 : i32
    return %c0_i32, %c0_i32_0 : i32, i32
  }
  func.func @transform_9(%arg0: i32) -> (i32, i32) {
    %c0_i32 = arith.constant 0 : i32
    %c0_i32_0 = arith.constant 0 : i32
    %c0_i32_1 = arith.constant 0 : i32
    return %c0_i32, %c0_i32_0 : i32, i32
  }
  func.func @transform_10(%arg0: i32) -> (i32, i32) {
    %c0_i32 = arith.constant 0 : i32
    %c0_i32_0 = arith.constant 0 : i32
    %c0_i32_1 = arith.constant 0 : i32
    return %c0_i32, %c0_i32_0 : i32, i32
  }
  func.func @transform_11(%arg0: i32) -> (i32, i32) {
    %c0_i32 = arith.constant 0 : i32
    %c0_i32_0 = arith.constant 0 : i32
    %c0_i32_1 = arith.constant 0 : i32
    return %c0_i32, %c0_i32_0 : i32, i32
  }
  func.func @transform_12(%arg0: i32) -> (i32, i32) {
    %c0_i32 = arith.constant 0 : i32
    %c0_i32_0 = arith.constant 0 : i32
    %c0_i32_1 = arith.constant 0 : i32
    return %c0_i32, %c0_i32_0 : i32, i32
  }
  func.func @transform_13(%arg0: i32) -> (i32, i32) {
    %c0_i32 = arith.constant 0 : i32
    %c0_i32_0 = arith.constant 0 : i32
    %c0_i32_1 = arith.constant 0 : i32
    return %c0_i32, %c0_i32_0 : i32, i32
  }
  func.func @transform_14(%arg0: i32) -> (i32, i32) {
    %c0_i32 = arith.constant 0 : i32
    %c0_i32_0 = arith.constant 0 : i32
    %c0_i32_1 = arith.constant 0 : i32
    return %c0_i32, %c0_i32_0 : i32, i32
  }
  func.func @transform_15(%arg0: i32) -> (i32, i32) {
    %c0_i32 = arith.constant 0 : i32
    %c0_i32_0 = arith.constant 0 : i32
    return %arg0, %c0_i32 : i32, i32
  }
}

</mosaic_0001>

<llo_original>
// kernel: net_level.1
$region0: #{net_level.1}
  #allocation0 [shape = 'u32[]', space=smem, size = 0x4, offset = 0x4, fixed_abs, tag = 'smem constant byte address 0x4 - core index']
  #allocation1 [shape = 'u32[72,128]{1,0:T(1,128)}', space=vmem, size = 0x9000, scoped, tag = 'internal scratch']
  %s0 = inlined_call_operand.vmem [shape: f32[4,4], index: 0, kind: input, shape index: {}]
  %s1 = inlined_call_operand.vmem [shape: f32[4,4], index: 1, kind: input, shape index: {}]
  %s2 = inlined_call_operand.vmem [shape: f32[4,4], index: 2, kind: input, shape index: {}]
  %s3 = inlined_call_operand.vmem [shape: bf16[4,64], index: 3, kind: input, shape index: {}]
  %s4 = inlined_call_operand.vmem [shape: bf16[4,64], index: 4, kind: input, shape index: {}]
  %s5 = inlined_call_operand.vmem [shape: bf16[4,64], index: 5, kind: input, shape index: {}]
  %s6 = inlined_call_operand.vmem [shape: f32[1,64], index: 6, kind: input, shape index: {}]
  %s7 = inlined_call_operand.vmem [shape: bf16[64,64], index: 7, kind: input, shape index: {}]
  %s8 = inlined_call_operand.vmem [shape: f32[1,64], index: 8, kind: input, shape index: {}]
  %s9 = inlined_call_operand.vmem [shape: bf16[64,64], index: 9, kind: input, shape index: {}]
  %s10 = inlined_call_operand.vmem [shape: f32[1,64], index: 10, kind: input, shape index: {}]
  %s11 = inlined_call_operand.vmem [shape: bf16[64,64], index: 11, kind: input, shape index: {}]
  %s12 = inlined_call_operand.vmem [shape: f32[1,64], index: 12, kind: input, shape index: {}]
  %s13 = inlined_call_operand.vmem [shape: bf16[64,4], index: 13, kind: input, shape index: {}]
  %s14 = inlined_call_operand.vmem [shape: f32[1,4], index: 14, kind: input, shape index: {}]
  %s15 = inlined_call_operand.vmem [shape: f32[4,4], index: 15, kind: output, shape index: {}]
  %s16 = sld [smem:[#allocation0]]
  $region70: #{net_level.1} parent=0
    _
  %s18 = ssub.s32 1, %s16
  %s19 = scalar_select 0, %s18, %s16
  // Predicated region
  $region2: #{net_level.1} parent=0 // pred_check
    _
  $region3: #{net_level.1} parent=0 // pred_check_branch
    %21 = sbr.rel (0) target = $region5
  $region4: #{net_level.1} parent=0 // pred_region
    _
  $region5: #{net_level.1} parent=0 // pred_fallthru
    _
  // Predicated region
  $region6: #{net_level.1} parent=0 // pred_check
    _
  $region7: #{net_level.1} parent=0 // pred_check_branch
    %23 = sbr.rel (0) target = $region9
  $region8: #{net_level.1} parent=0 // pred_region
    _
  $region9: #{net_level.1} parent=0 // pred_fallthru
    _
  // Predicated region
  $region10: #{net_level.1} parent=0 // pred_check
    _
  $region11: #{net_level.1} parent=0 // pred_check_branch
    %25 = sbr.rel (0) target = $region13
  $region12: #{net_level.1} parent=0 // pred_region
    _
  $region13: #{net_level.1} parent=0 // pred_fallthru
    _
  // Predicated region
  $region14: #{net_level.1} parent=0 // pred_check
    _
  $region15: #{net_level.1} parent=0 // pred_check_branch
    %27 = sbr.rel (0) target = $region17
  $region16: #{net_level.1} parent=0 // pred_region
    _
  $region17: #{net_level.1} parent=0 // pred_fallthru
    _
  // Predicated region
  $region18: #{net_level.1} parent=0 // pred_check
    _
  $region19: #{net_level.1} parent=0 // pred_check_branch
    %29 = sbr.rel (0) target = $region21
  $region20: #{net_level.1} parent=0 // pred_region
    _
  $region21: #{net_level.1} parent=0 // pred_fallthru
    _
  // Predicated region
  $region22: #{net_level.1} parent=0 // pred_check
    _
  $region23: #{net_level.1} parent=0 // pred_check_branch
    %31 = sbr.rel (0) target = $region25
  $region24: #{net_level.1} parent=0 // pred_region
    _
  $region25: #{net_level.1} parent=0 // pred_fallthru
    _
  // Predicated region
  $region26: #{net_level.1} parent=0 // pred_check
    _
  $region27: #{net_level.1} parent=0 // pred_check_branch
    %33 = sbr.rel (0) target = $region29
  $region28: #{net_level.1} parent=0 // pred_region
    _
  $region29: #{net_level.1} parent=0 // pred_fallthru
    _
  // Predicated region
  $region30: #{net_level.1} parent=0 // pred_check
    _
  $region31: #{net_level.1} parent=0 // pred_check_branch
    %35 = sbr.rel (0) target = $region33
  $region32: #{net_level.1} parent=0 // pred_region
    _
  $region33: #{net_level.1} parent=0 // pred_fallthru
    _
  // Predicated region
  $region34: #{net_level.1} parent=0 // pred_check
    _
  $region35: #{net_level.1} parent=0 // pred_check_branch
    %37 = sbr.rel (0) target = $region37
  $region36: #{net_level.1} parent=0 // pred_region
    _
  $region37: #{net_level.1} parent=0 // pred_fallthru
    _
  // Predicated region
  $region38: #{net_level.1} parent=0 // pred_check
    _
  $region39: #{net_level.1} parent=0 // pred_check_branch
    %39 = sbr.rel (0) target = $region41
  $region40: #{net_level.1} parent=0 // pred_region
    _
  $region41: #{net_level.1} parent=0 // pred_fallthru
    _
  // Predicated region
  $region42: #{net_level.1} parent=0 // pred_check
    _
  $region43: #{net_level.1} parent=0 // pred_check_branch
    %41 = sbr.rel (0) target = $region45
  $region44: #{net_level.1} parent=0 // pred_region
    _
  $region45: #{net_level.1} parent=0 // pred_fallthru
    _
  // Predicated region
  $region46: #{net_level.1} parent=0 // pred_check
    _
  $region47: #{net_level.1} parent=0 // pred_check_branch
    %43 = sbr.rel (0) target = $region49
  $region48: #{net_level.1} parent=0 // pred_region
    _
  $region49: #{net_level.1} parent=0 // pred_fallthru
    _
  // Predicated region
  $region50: #{net_level.1} parent=0 // pred_check
    _
  $region51: #{net_level.1} parent=0 // pred_check_branch
    %45 = sbr.rel (0) target = $region53
  $region52: #{net_level.1} parent=0 // pred_region
    _
  $region53: #{net_level.1} parent=0 // pred_fallthru
    _
  // Predicated region
  $region54: #{net_level.1} parent=0 // pred_check
    _
  $region55: #{net_level.1} parent=0 // pred_check_branch
    %47 = sbr.rel (0) target = $region57
  $region56: #{net_level.1} parent=0 // pred_region
    _
  $region57: #{net_level.1} parent=0 // pred_fallthru
    _
  // Predicated region
  $region58: #{net_level.1} parent=0 // pred_check
    _
  $region59: #{net_level.1} parent=0 // pred_check_branch
    %49 = sbr.rel (0) target = $region61
  $region60: #{net_level.1} parent=0 // pred_region
    _
  $region61: #{net_level.1} parent=0 // pred_fallthru
    _
  %v51 = vld [vmem:[%s6] sm:$0x1]
  %v52 = vld [vmem:[%s0] sm:$0xf]
  %v53 = vpack.c.bf16 %v52, %v52
  %v54 = vld [vmem:[%s3] sm:$0x3]
  %vm55 = vcmask 31744
  %v57 = vsel %vm55, %v53, 0
  %vm59 = vcmask 1041408
  %v61 = vsel %vm59, %v54, 0
  %63 = vmatpush.bf16.msra.mxu0 0
  %64 = vmatpush.bf16.msra.mxu0 0
  %65 = vmatpush.bf16.msra.mxu0 0
  %66 = vmatpush.bf16.msra.mxu0 0
  %67 = vmatpush.bf16.msra.mxu0 0
  %68 = vmatpush.bf16.msra.mxu0 0
  %69 = vmatpush.bf16.msra.mxu0 0
  %70 = vmatpush.bf16.msra.mxu0 %v61
  %71 = vmatmul.bf16.gmra.mxu0 %v57
  %v72 = vpop.f32.mrf.mxu0
  %v73 = vadd.f32 0.0, %v72
  %v74 = vpop.f32.mrf.mxu0
  %75 = vdwg.mxu0
  %v77 = vperm.slane %v51, 0
  %v79 = vadd.f32 %v77, %v73
  %v80 = vld [vmem:[%s1] sm:$0xf]
  %v81 = vpack.c.bf16 %v80, %v80
  %v82 = vld [vmem:[%s4] sm:$0x3]
  %v84 = vsel %vm55, %v81, 0
  %v87 = vsel %vm59, %v82, 0
  %89 = vmatpush.bf16.msra.mxu0 0
  %90 = vmatpush.bf16.msra.mxu0 0
  %91 = vmatpush.bf16.msra.mxu0 0
  %92 = vmatpush.bf16.msra.mxu0 0
  %93 = vmatpush.bf16.msra.mxu0 0
  %94 = vmatpush.bf16.msra.mxu0 0
  %95 = vmatpush.bf16.msra.mxu0 0
  %96 = vmatpush.bf16.msra.mxu0 %v87
  %97 = vmatmul.bf16.gmra.mxu0 %v84
  %v98 = vpop.f32.mrf.mxu0
  %v99 = vadd.f32 0.0, %v98
  %v100 = vpop.f32.mrf.mxu0
  %101 = vdwg.mxu0
  %v102 = vadd.f32 %v79, %v99
  %v103 = vld [vmem:[%s2] sm:$0xf]
  %v104 = vpack.c.bf16 %v103, %v103
  %v105 = vld [vmem:[%s5] sm:$0x3]
  %v107 = vsel %vm55, %v104, 0
  %v110 = vsel %vm59, %v105, 0
  %112 = vmatpush.bf16.msra.mxu0 0
  %113 = vmatpush.bf16.msra.mxu0 0
  %114 = vmatpush.bf16.msra.mxu0 0
  %115 = vmatpush.bf16.msra.mxu0 0
  %116 = vmatpush.bf16.msra.mxu0 0
  %117 = vmatpush.bf16.msra.mxu0 0
  %118 = vmatpush.bf16.msra.mxu0 0
  %119 = vmatpush.bf16.msra.mxu0 %v110
  %120 = vmatmul.bf16.gmra.mxu0 %v107
  %v121 = vpop.f32.mrf.mxu0
  %v122 = vadd.f32 0.0, %v121
  %v123 = vpop.f32.mrf.mxu0
  %124 = vdwg.mxu0
  %v125 = vadd.f32 %v102, %v122
  %vm126 = vcmp.ge.f32.partialorder %v125, 0.0
  %v127 = vmul.f32 %v125, 0.2
  %v128 = vsel %vm126, %v125, %v127
  %v129 = vpack.c.bf16 %v128, %v128
  %v130 = vld [vmem:[%s7] sm:$0xf]
  %v131 = vld [vmem:[%s7 + $0x4] sm:$0xf]
  %v132 = vld [vmem:[%s7 + $0x8] sm:$0xf]
  %v133 = vld [vmem:[%s7 + $0xc] sm:$0xf]
  %v134 = vld [vmem:[%s7 + $0x10] sm:$0xf]
  %v135 = vld [vmem:[%s7 + $0x14] sm:$0xf]
  %v136 = vld [vmem:[%s7 + $0x18] sm:$0xf]
  %v137 = vld [vmem:[%s7 + $0x1c] sm:$0xf]
  %v138 = vld [vmem:[%s8] sm:$0x1]
  %v140 = vperm.slane %v138, 0
  %v150 = vunpack.c.l.b16 %v130
  %v151 = vunpack.c.l.b16 %v131
  %v152 = vunpack.c.l.b16 %v132
  %v153 = vunpack.c.l.b16 %v133
  %v154 = vunpack.c.l.b16 %v134
  %v155 = vunpack.c.l.b16 %v135
  %v156 = vunpack.c.l.b16 %v136
  %v157 = vunpack.c.l.b16 %v137
  %v158 = vpack.c.b16 %v151, %v150
  %v159 = vpack.c.b16 %v153, %v152
  %v160 = vpack.c.b16 %v155, %v154
  %v161 = vpack.c.b16 %v157, %v156
  %vm166 = vcmask 523264
  %v168 = vsel %vm166, %v129, 0
  %170 = vmatpush.bf16.msra.mxu0 0
  %171 = vmatpush.bf16.msra.mxu0 0
  %172 = vmatpush.bf16.msra.mxu0 0
  %173 = vmatpush.bf16.msra.mxu0 0
  %174 = vmatpush.bf16.msra.mxu0 %v161
  %175 = vmatpush.bf16.msra.mxu0 %v160
  %176 = vmatpush.bf16.msra.mxu0 %v159
  %177 = vmatpush.bf16.msra.mxu0 %v158
  %178 = vmatmul.bf16.gmra.mxu0 %v168
  %v179 = vpop.f32.mrf.mxu0
  %v180 = vadd.f32 %v140, %v179
  %v181 = vpop.f32.mrf.mxu0
  %182 = vdwg.mxu0
  %vm183 = vcmp.ge.f32.partialorder %v180, 0.0
  %v184 = vmul.f32 %v180, 0.2
  %v185 = vsel %vm183, %v180, %v184
  %v186 = vpack.c.bf16 %v185, %v185
  %v187 = vld [vmem:[%s9] sm:$0xf]
  %v188 = vld [vmem:[%s9 + $0x4] sm:$0xf]
  %v189 = vld [vmem:[%s9 + $0x8] sm:$0xf]
  %v190 = vld [vmem:[%s9 + $0xc] sm:$0xf]
  %v191 = vld [vmem:[%s9 + $0x10] sm:$0xf]
  %v192 = vld [vmem:[%s9 + $0x14] sm:$0xf]
  %v193 = vld [vmem:[%s9 + $0x18] sm:$0xf]
  %v194 = vld [vmem:[%s9 + $0x1c] sm:$0xf]
  %v195 = vld [vmem:[%s10] sm:$0x1]
  %v197 = vperm.slane %v195, 0
  %v207 = vunpack.c.l.b16 %v187
  %v208 = vunpack.c.l.b16 %v188
  %v209 = vunpack.c.l.b16 %v189
  %v210 = vunpack.c.l.b16 %v190
  %v211 = vunpack.c.l.b16 %v191
  %v212 = vunpack.c.l.b16 %v192
  %v213 = vunpack.c.l.b16 %v193
  %v214 = vunpack.c.l.b16 %v194
  %v215 = vpack.c.b16 %v208, %v207
  %v216 = vpack.c.b16 %v210, %v209
  %v217 = vpack.c.b16 %v212, %v211
  %v218 = vpack.c.b16 %v214, %v213
  %v224 = vsel %vm166, %v186, 0
  %226 = vmatpush.bf16.msra.mxu0 0
  %227 = vmatpush.bf16.msra.mxu0 0
  %228 = vmatpush.bf16.msra.mxu0 0
  %229 = vmatpush.bf16.msra.mxu0 0
  %230 = vmatpush.bf16.msra.mxu0 %v218
  %231 = vmatpush.bf16.msra.mxu0 %v217
  %232 = vmatpush.bf16.msra.mxu0 %v216
  %233 = vmatpush.bf16.msra.mxu0 %v215
  %234 = vmatmul.bf16.gmra.mxu0 %v224
  %v235 = vpop.f32.mrf.mxu0
  %v236 = vadd.f32 %v197, %v235
  %v237 = vpop.f32.mrf.mxu0
  %238 = vdwg.mxu0
  %vm239 = vcmp.ge.f32.partialorder %v236, 0.0
  %v240 = vmul.f32 %v236, 0.2
  %v241 = vsel %vm239, %v236, %v240
  %v242 = vpack.c.bf16 %v241, %v241
  %v243 = vld [vmem:[%s11] sm:$0xf]
  %v244 = vld [vmem:[%s11 + $0x4] sm:$0xf]
  %v245 = vld [vmem:[%s11 + $0x8] sm:$0xf]
  %v246 = vld [vmem:[%s11 + $0xc] sm:$0xf]
  %v247 = vld [vmem:[%s11 + $0x10] sm:$0xf]
  %v248 = vld [vmem:[%s11 + $0x14] sm:$0xf]
  %v249 = vld [vmem:[%s11 + $0x18] sm:$0xf]
  %v250 = vld [vmem:[%s11 + $0x1c] sm:$0xf]
  %v251 = vld [vmem:[%s12] sm:$0x1]
  %v253 = vperm.slane %v251, 0
  %v263 = vunpack.c.l.b16 %v243
  %v264 = vunpack.c.l.b16 %v244
  %v265 = vunpack.c.l.b16 %v245
  %v266 = vunpack.c.l.b16 %v246
  %v267 = vunpack.c.l.b16 %v247
  %v268 = vunpack.c.l.b16 %v248
  %v269 = vunpack.c.l.b16 %v249
  %v270 = vunpack.c.l.b16 %v250
  %v271 = vpack.c.b16 %v264, %v263
  %v272 = vpack.c.b16 %v266, %v265
  %v273 = vpack.c.b16 %v268, %v267
  %v274 = vpack.c.b16 %v270, %v269
  %v280 = vsel %vm166, %v242, 0
  %282 = vmatpush.bf16.msra.mxu0 0
  %283 = vmatpush.bf16.msra.mxu0 0
  %284 = vmatpush.bf16.msra.mxu0 0
  %285 = vmatpush.bf16.msra.mxu0 0
  %286 = vmatpush.bf16.msra.mxu0 %v274
  %287 = vmatpush.bf16.msra.mxu0 %v273
  %288 = vmatpush.bf16.msra.mxu0 %v272
  %289 = vmatpush.bf16.msra.mxu0 %v271
  %290 = vmatmul.bf16.gmra.mxu0 %v280
  %v291 = vpop.f32.mrf.mxu0
  %v292 = vadd.f32 %v253, %v291
  %v293 = vpop.f32.mrf.mxu0
  %294 = vdwg.mxu0
  %vm295 = vcmp.ge.f32.partialorder %v292, 0.0
  %v296 = vmul.f32 %v292, 0.2
  %v297 = vsel %vm295, %v292, %v296
  %v298 = vpack.c.bf16 %v297, %v297
  %v299 = vld [vmem:[%s13] sm:$0xf]
  %v300 = vld [vmem:[%s13 + $0x4] sm:$0xf]
  %v301 = vld [vmem:[%s13 + $0x8] sm:$0xf]
  %v302 = vld [vmem:[%s13 + $0xc] sm:$0xf]
  %v303 = vld [vmem:[%s13 + $0x10] sm:$0xf]
  %v304 = vld [vmem:[%s13 + $0x14] sm:$0xf]
  %v305 = vld [vmem:[%s13 + $0x18] sm:$0xf]
  %v306 = vld [vmem:[%s13 + $0x1c] sm:$0xf]
  %v307 = vld [vmem:[%s14] sm:$0x1]
  %v309 = vperm.slane %v307, 0
  %v319 = vunpack.c.l.b16 %v299
  %v320 = vunpack.c.l.b16 %v300
  %v321 = vunpack.c.l.b16 %v301
  %v322 = vunpack.c.l.b16 %v302
  %v323 = vunpack.c.l.b16 %v303
  %v324 = vunpack.c.l.b16 %v304
  %v325 = vunpack.c.l.b16 %v305
  %v326 = vunpack.c.l.b16 %v306
  %v327 = vpack.c.b16 %v320, %v319
  %v328 = vpack.c.b16 %v322, %v321
  %v329 = vpack.c.b16 %v324, %v323
  %v330 = vpack.c.b16 %v326, %v325
  %v336 = vsel %vm166, %v298, 0
  %338 = vmatpush.bf16.msra.mxu0 0
  %339 = vmatpush.bf16.msra.mxu0 0
  %340 = vmatpush.bf16.msra.mxu0 0
  %341 = vmatpush.bf16.msra.mxu0 0
  %342 = vmatpush.bf16.msra.mxu0 %v330
  %343 = vmatpush.bf16.msra.mxu0 %v329
  %344 = vmatpush.bf16.msra.mxu0 %v328
  %345 = vmatpush.bf16.msra.mxu0 %v327
  %346 = vmatmul.bf16.gmra.mxu0 %v336
  %v347 = vpop.f32.mrf.mxu0
  %v348 = vadd.f32 %v309, %v347
  %v349 = vpop.f32.mrf.mxu0
  %350 = vdwg.mxu0
  %vm351 = vcmask 27648
  %352 = vst.msk [vmem:[%s15] sm:$0xf] %vm351, %v348
  // Predicated region
  $region62: #{net_level.1} parent=0 // pred_check
    _
  $region63: #{net_level.1} parent=0 // pred_check_branch
    %354 = sbr.rel (0) target = $region65
  $region64: #{net_level.1} parent=0 // pred_region
    _
  $region65: #{net_level.1} parent=0 // pred_fallthru
    _
  // Predicated region
  $region66: #{net_level.1} parent=0 // pred_check
    _
  $region67: #{net_level.1} parent=0 // pred_check_branch
    %356 = sbr.rel (0) target = $region69
  $region68: #{net_level.1} parent=0 // pred_region
    _
  $region69: #{net_level.1} parent=0 // pred_fallthru
    _

</llo_original>
